<compile_context>
chip_gen: v7x
topology: tpu7x:2x2x1
jax: 0.10.0
libtpu: 0.0.40
codegen_flags: <defaults>
</compile_context>

<pallas_src>
import jax
import jax.numpy as jnp
from jax import lax
from jax.experimental import pallas as pl
from jax.experimental.pallas import tpu as pltpu


def _lstm_encoder_kernel(x_ref, wih_ref, whh_ref, b_ref, out_ref):
    """Single-invocation LSTM encoder.

    x_ref   : (T*B, D)  time-major rows (row = t*B + b)
    wih_ref : (D, 4H)   W_ih^T with g-gate columns pre-scaled by 2
    whh_ref : (H, 4H)   W_hh^T with g-gate columns pre-scaled by 2
    b_ref   : (1, 4H)   b_ih + b_hh with g-gate entries pre-scaled by 2
    out_ref : (B, 4H)   packed lane-dense output [ h | c | tanh(h) | 0 ]
    """
    TB = x_ref.shape[0]
    fourH = wih_ref.shape[1]
    H = fourH // 4
    B = out_ref.shape[0]
    T = TB // B

    # ---- Prologue (off the serial chain): project every timestep at once. ----
    # bf16 MXU operands, f32 accumulate; result lives in T (8,128) vregs (32 KiB).
    xw = (jnp.dot(x_ref[...].astype(jnp.bfloat16),
                  wih_ref[...].astype(jnp.bfloat16),
                  preferred_element_type=jnp.float32)
          + b_ref[...])                                    # (T*B, 4H), bias folded once

    # Hoisted loop invariants (emitted exactly once, not per unrolled step).
    whh_bf = whh_ref[...].astype(jnp.bfloat16)             # (H, 4H), cast once
    lane = lax.broadcasted_iota(jnp.int32, (B, fourH), 1)
    g_lane = jnp.logical_and(lane >= 2 * H, lane < 3 * H)  # lanes of the tanh (g) gate

    h = jnp.zeros((B, H), jnp.float32)
    c = jnp.zeros((B, H), jnp.float32)

    # ---- Recurrence: fully unrolled; h/c live in vregs. ----
    for t in range(T):
        gates = (jnp.dot(h.astype(jnp.bfloat16), whh_bf,
                         preferred_element_type=jnp.float32)
                 + xw[t * B:(t + 1) * B, :])               # tile-aligned vreg slice
        sg = jax.nn.sigmoid(gates)                         # single EUP push, 128 lanes
        # g columns were pre-scaled by 2, so tanh(g) = 2*sigmoid(2g) - 1 (VPU fma+select).
        act = jnp.where(g_lane, 2.0 * sg - 1.0, sg)
        i_g = act[:, 0 * H:1 * H]
        f_g = act[:, 1 * H:2 * H]
        g_g = act[:, 2 * H:3 * H]
        o_g = act[:, 3 * H:4 * H]
        c = f_g * c + i_g * g_g
        h = o_g * jnp.tanh(c)

    # ---- Lane-dense epilogue: one unmasked (8,128) store. ----
    # TODO(synk): out_activ is a constructor argument of the PyTorch module; it is
    # assumed to be tanh here (h_activ is unused in forward()).
    packed = jnp.concatenate(
        [h, c, jnp.tanh(h), jnp.zeros((B, H), jnp.float32)], axis=1)
    out_ref[...] = packed


def lstm_encoder_pallas(x_btd, w_ih, w_hh, b_ih, b_hh):
    """x_btd: (B, T, D) float32.  PyTorch LSTM parameter shapes:
       w_ih (4H, D), w_hh (4H, H), b_ih (4H,), b_hh (4H,)."""
    B, T, D = x_btd.shape
    fourH = w_ih.shape[0]
    H = fourH // 4

    # Time-major rows: per-step operand in the kernel is one tile-aligned (8,128) vreg.
    # (~16 KiB transpose in the wrapper, negligible and off the serial chain.)
    x_flat = jnp.transpose(x_btd, (1, 0, 2)).reshape(T * B, D)

    # Pre-scale the g-gate block by 2 so tanh becomes 2*sigmoid-1 inside the kernel.
    gate_scale = jnp.concatenate([
        jnp.ones((2 * H,), jnp.float32),
        jnp.full((H,), 2.0, jnp.float32),
        jnp.ones((H,), jnp.float32),
    ])
    wih_t = jnp.transpose(w_ih, (1, 0)) * gate_scale[None, :]   # (D, 4H)
    whh_t = jnp.transpose(w_hh, (1, 0)) * gate_scale[None, :]   # (H, 4H)
    bias = ((b_ih + b_hh) * gate_scale).reshape(1, fourH)       # (1, 4H)

    vmem = pltpu.MemorySpace.VMEM
    packed = pl.pallas_call(
        _lstm_encoder_kernel,
        out_shape=jax.ShapeDtypeStruct((B, fourH), jnp.float32),
        in_specs=[
            pl.BlockSpec(memory_space=vmem),   # x      (T*B, D)
            pl.BlockSpec(memory_space=vmem),   # W_ih^T (D, 4H)
            pl.BlockSpec(memory_space=vmem),   # W_hh^T (H, 4H)
            pl.BlockSpec(memory_space=vmem),   # bias   (1, 4H)
        ],
        out_specs=pl.BlockSpec(memory_space=vmem),
    )(x_flat, wih_t, whh_t, bias)

    h_n = packed[:, 0 * H:1 * H]
    c_n = packed[:, 1 * H:2 * H]
    act = packed[:, 2 * H:3 * H]

    # PyTorch returns (num_layers=1, B, H) for hidden/cell; out = tanh(h_n.squeeze()).
    return (h_n[None, :, :], c_n[None, :, :]), act


def _reference_lstm(x_btd, w_ih, w_hh, b_ih, b_hh):
    """Pure-JAX f32 reference of the same recurrence (PyTorch gate order i,f,g,o)."""
    B, T, D = x_btd.shape
    H = w_hh.shape[1]
    bias = b_ih + b_hh

    def step(carry, x_t):
        h, c = carry
        gates = x_t @ w_ih.T + h @ w_hh.T + bias
        i = jax.nn.sigmoid(gates[:, 0 * H:1 * H])
        f = jax.nn.sigmoid(gates[:, 1 * H:2 * H])
        g = jnp.tanh(gates[:, 2 * H:3 * H])
        o = jax.nn.sigmoid(gates[:, 3 * H:4 * H])
        c_new = f * c + i * g
        h_new = o * jnp.tanh(c_new)
        return (h_new, c_new), None

    h0 = jnp.zeros((B, H), jnp.float32)
    c0 = jnp.zeros((B, H), jnp.float32)
    (h_n, c_n), _ = lax.scan(step, (h0, c0), jnp.transpose(x_btd, (1, 0, 2)))
    return (h_n[None], c_n[None]), jnp.tanh(h_n)


if __name__ == "__main__":
    # Small, TPU-friendly shapes: batch=8, seq=8, input_dim=16, hidden=32 (4H=128).
    B, T, D, H = 8, 8, 16, 32

    key = jax.random.PRNGKey(0)
    kx, k1, k2, k3, k4 = jax.random.split(key, 5)

    # Deterministic parameter init (PyTorch default: U(-1/sqrt(H), 1/sqrt(H))).
    bound = 1.0 / jnp.sqrt(jnp.float32(H))
    w_ih = jax.random.uniform(k1, (4 * H, D), jnp.float32, -bound, bound)
    w_hh = jax.random.uniform(k2, (4 * H, H), jnp.float32, -bound, bound)
    b_ih = jax.random.uniform(k3, (4 * H,), jnp.float32, -bound, bound)
    b_hh = jax.random.uniform(k4, (4 * H,), jnp.float32, -bound, bound)

    x = jax.random.normal(kx, (B, T, D), jnp.float32)

    (h_n, c_n), out = lstm_encoder_pallas(x, w_ih, w_hh, b_ih, b_hh)
    jax.block_until_ready((h_n, c_n, out))

    (h_ref, c_ref), out_ref = _reference_lstm(x, w_ih, w_hh, b_ih, b_hh)
    # bf16 MXU operands over T recurrent steps => looser tolerance than the f32 path.
    assert jnp.allclose(h_n, h_ref, rtol=5e-2, atol=5e-2)
    assert jnp.allclose(c_n, c_ref, rtol=5e-2, atol=5e-2)
    assert jnp.allclose(out, out_ref, rtol=5e-2, atol=5e-2)

    print("KERNEL_OK")
</pallas_src>

<mosaic_0001>
module attributes {stable_mosaic.version = 11 : i64} {
  func.func @_lstm_encoder_kernel(%arg0: memref<64x16xf32, #tpu.memory_space<vmem>>, %arg1: memref<16x128xf32, #tpu.memory_space<vmem>>, %arg2: memref<32x128xf32, #tpu.memory_space<vmem>>, %arg3: memref<1x128xf32, #tpu.memory_space<vmem>>, %arg4: memref<8x128xf32, #tpu.memory_space<vmem>>) attributes {dimension_semantics = [], scalar_prefetch = 0 : i64, scratch_operands = 0 : i64, tpu.core_type = #tpu.core_type<tc>} {
    %c0 = arith.constant 0 : index
    %c0_0 = arith.constant 0 : index
    %0 = vector.load %arg0[%c0, %c0_0] : memref<64x16xf32, #tpu.memory_space<vmem>>, vector<64x16xf32>
    %1 = arith.truncf %0 : vector<64x16xf32> to vector<64x16xbf16>
    %c0_1 = arith.constant 0 : index
    %c0_2 = arith.constant 0 : index
    %2 = vector.load %arg1[%c0_1, %c0_2] : memref<16x128xf32, #tpu.memory_space<vmem>>, vector<16x128xf32>
    %3 = arith.truncf %2 : vector<16x128xf32> to vector<16x128xbf16>
    %cst = arith.constant dense<0.000000e+00> : vector<64x128xf32>
    %4 = tpu.matmul %1, %3, %cst {dimension_numbers = #tpu.dot_dimension_numbers<[1], [0], [0], [1], [0, 0, 1, 1], [], []>} : vector<64x16xbf16>, vector<16x128xbf16>, vector<64x128xf32> -> vector<64x128xf32>
    %c0_3 = arith.constant 0 : index
    %c0_4 = arith.constant 0 : index
    %5 = vector.load %arg3[%c0_3, %c0_4] : memref<1x128xf32, #tpu.memory_space<vmem>>, vector<1x128xf32>
    %6 = vector.broadcast %5 : vector<1x128xf32> to vector<64x128xf32>
    %7 = arith.addf %4, %6 : vector<64x128xf32>
    %c0_5 = arith.constant 0 : index
    %c0_6 = arith.constant 0 : index
    %8 = vector.load %arg2[%c0_5, %c0_6] : memref<32x128xf32, #tpu.memory_space<vmem>>, vector<32x128xf32>
    %9 = arith.truncf %8 : vector<32x128xf32> to vector<32x128xbf16>
    %10 = tpu.iota {dimensions = array<i32: 1>} : vector<8x128xi32>
    %c64_i32 = arith.constant 64 : i32
    %11 = vector.broadcast %c64_i32 : i32 to vector<8x128xi32>
    %12 = arith.cmpi sge, %10, %11 : vector<8x128xi32>
    %c96_i32 = arith.constant 96 : i32
    %13 = vector.broadcast %c96_i32 : i32 to vector<8x128xi32>
    %14 = arith.cmpi slt, %10, %13 : vector<8x128xi32>
    %15 = arith.andi %12, %14 : vector<8x128xi1>
    %cst_7 = arith.constant 0.000000e+00 : f32
    %16 = vector.broadcast %cst_7 : f32 to vector<8x32xf32>
    %cst_8 = arith.constant 0.000000e+00 : f32
    %17 = vector.broadcast %cst_8 : f32 to vector<8x32xf32>
    %18 = arith.truncf %16 : vector<8x32xf32> to vector<8x32xbf16>
    %cst_9 = arith.constant dense<0.000000e+00> : vector<8x128xf32>
    %19 = tpu.matmul %18, %9, %cst_9 {dimension_numbers = #tpu.dot_dimension_numbers<[1], [0], [0], [1], [0, 0, 1, 1], [], []>} : vector<8x32xbf16>, vector<32x128xbf16>, vector<8x128xf32> -> vector<8x128xf32>
    %20 = vector.extract_strided_slice %7 {offsets = [0, 0], sizes = [8, 128], strides = [1, 1]} : vector<64x128xf32> to vector<8x128xf32>
    %21 = arith.addf %19, %20 : vector<8x128xf32>
    %22 = arith.negf %21 : vector<8x128xf32>
    %23 = math.exp %22 : vector<8x128xf32>
    %cst_10 = arith.constant 1.000000e+00 : f32
    %24 = vector.broadcast %cst_10 : f32 to vector<8x128xf32>
    %25 = arith.addf %24, %23 : vector<8x128xf32>
    %26 = arith.divf %24, %25 : vector<8x128xf32>
    %cst_11 = arith.constant 2.000000e+00 : f32
    %27 = vector.broadcast %cst_11 : f32 to vector<8x128xf32>
    %28 = arith.mulf %27, %26 : vector<8x128xf32>
    %cst_12 = arith.constant 1.000000e+00 : f32
    %29 = vector.broadcast %cst_12 : f32 to vector<8x128xf32>
    %30 = arith.subf %28, %29 : vector<8x128xf32>
    %31 = arith.select %15, %30, %26 : vector<8x128xi1>, vector<8x128xf32>
    %32 = vector.extract_strided_slice %31 {offsets = [0, 0], sizes = [8, 32], strides = [1, 1]} : vector<8x128xf32> to vector<8x32xf32>
    %33 = vector.extract_strided_slice %31 {offsets = [0, 32], sizes = [8, 32], strides = [1, 1]} : vector<8x128xf32> to vector<8x32xf32>
    %34 = vector.extract_strided_slice %31 {offsets = [0, 64], sizes = [8, 32], strides = [1, 1]} : vector<8x128xf32> to vector<8x32xf32>
    %35 = vector.extract_strided_slice %31 {offsets = [0, 96], sizes = [8, 32], strides = [1, 1]} : vector<8x128xf32> to vector<8x32xf32>
    %36 = arith.mulf %33, %17 : vector<8x32xf32>
    %37 = arith.mulf %32, %34 : vector<8x32xf32>
    %38 = arith.addf %36, %37 : vector<8x32xf32>
    %39 = math.tanh %38 : vector<8x32xf32>
    %40 = arith.mulf %35, %39 : vector<8x32xf32>
    %41 = arith.truncf %40 : vector<8x32xf32> to vector<8x32xbf16>
    %cst_13 = arith.constant dense<0.000000e+00> : vector<8x128xf32>
    %42 = tpu.matmul %41, %9, %cst_13 {dimension_numbers = #tpu.dot_dimension_numbers<[1], [0], [0], [1], [0, 0, 1, 1], [], []>} : vector<8x32xbf16>, vector<32x128xbf16>, vector<8x128xf32> -> vector<8x128xf32>
    %43 = vector.extract_strided_slice %7 {offsets = [8, 0], sizes = [8, 128], strides = [1, 1]} : vector<64x128xf32> to vector<8x128xf32>
    %44 = arith.addf %42, %43 : vector<8x128xf32>
    %45 = arith.negf %44 : vector<8x128xf32>
    %46 = math.exp %45 : vector<8x128xf32>
    %cst_14 = arith.constant 1.000000e+00 : f32
    %47 = vector.broadcast %cst_14 : f32 to vector<8x128xf32>
    %48 = arith.addf %47, %46 : vector<8x128xf32>
    %49 = arith.divf %47, %48 : vector<8x128xf32>
    %cst_15 = arith.constant 2.000000e+00 : f32
    %50 = vector.broadcast %cst_15 : f32 to vector<8x128xf32>
    %51 = arith.mulf %50, %49 : vector<8x128xf32>
    %cst_16 = arith.constant 1.000000e+00 : f32
    %52 = vector.broadcast %cst_16 : f32 to vector<8x128xf32>
    %53 = arith.subf %51, %52 : vector<8x128xf32>
    %54 = arith.select %15, %53, %49 : vector<8x128xi1>, vector<8x128xf32>
    %55 = vector.extract_strided_slice %54 {offsets = [0, 0], sizes = [8, 32], strides = [1, 1]} : vector<8x128xf32> to vector<8x32xf32>
    %56 = vector.extract_strided_slice %54 {offsets = [0, 32], sizes = [8, 32], strides = [1, 1]} : vector<8x128xf32> to vector<8x32xf32>
    %57 = vector.extract_strided_slice %54 {offsets = [0, 64], sizes = [8, 32], strides = [1, 1]} : vector<8x128xf32> to vector<8x32xf32>
    %58 = vector.extract_strided_slice %54 {offsets = [0, 96], sizes = [8, 32], strides = [1, 1]} : vector<8x128xf32> to vector<8x32xf32>
    %59 = arith.mulf %56, %38 : vector<8x32xf32>
    %60 = arith.mulf %55, %57 : vector<8x32xf32>
    %61 = arith.addf %59, %60 : vector<8x32xf32>
    %62 = math.tanh %61 : vector<8x32xf32>
    %63 = arith.mulf %58, %62 : vector<8x32xf32>
    %64 = arith.truncf %63 : vector<8x32xf32> to vector<8x32xbf16>
    %cst_17 = arith.constant dense<0.000000e+00> : vector<8x128xf32>
    %65 = tpu.matmul %64, %9, %cst_17 {dimension_numbers = #tpu.dot_dimension_numbers<[1], [0], [0], [1], [0, 0, 1, 1], [], []>} : vector<8x32xbf16>, vector<32x128xbf16>, vector<8x128xf32> -> vector<8x128xf32>
    %66 = vector.extract_strided_slice %7 {offsets = [16, 0], sizes = [8, 128], strides = [1, 1]} : vector<64x128xf32> to vector<8x128xf32>
    %67 = arith.addf %65, %66 : vector<8x128xf32>
    %68 = arith.negf %67 : vector<8x128xf32>
    %69 = math.exp %68 : vector<8x128xf32>
    %cst_18 = arith.constant 1.000000e+00 : f32
    %70 = vector.broadcast %cst_18 : f32 to vector<8x128xf32>
    %71 = arith.addf %70, %69 : vector<8x128xf32>
    %72 = arith.divf %70, %71 : vector<8x128xf32>
    %cst_19 = arith.constant 2.000000e+00 : f32
    %73 = vector.broadcast %cst_19 : f32 to vector<8x128xf32>
    %74 = arith.mulf %73, %72 : vector<8x128xf32>
    %cst_20 = arith.constant 1.000000e+00 : f32
    %75 = vector.broadcast %cst_20 : f32 to vector<8x128xf32>
    %76 = arith.subf %74, %75 : vector<8x128xf32>
    %77 = arith.select %15, %76, %72 : vector<8x128xi1>, vector<8x128xf32>
    %78 = vector.extract_strided_slice %77 {offsets = [0, 0], sizes = [8, 32], strides = [1, 1]} : vector<8x128xf32> to vector<8x32xf32>
    %79 = vector.extract_strided_slice %77 {offsets = [0, 32], sizes = [8, 32], strides = [1, 1]} : vector<8x128xf32> to vector<8x32xf32>
    %80 = vector.extract_strided_slice %77 {offsets = [0, 64], sizes = [8, 32], strides = [1, 1]} : vector<8x128xf32> to vector<8x32xf32>
    %81 = vector.extract_strided_slice %77 {offsets = [0, 96], sizes = [8, 32], strides = [1, 1]} : vector<8x128xf32> to vector<8x32xf32>
    %82 = arith.mulf %79, %61 : vector<8x32xf32>
    %83 = arith.mulf %78, %80 : vector<8x32xf32>
    %84 = arith.addf %82, %83 : vector<8x32xf32>
    %85 = math.tanh %84 : vector<8x32xf32>
    %86 = arith.mulf %81, %85 : vector<8x32xf32>
    %87 = arith.truncf %86 : vector<8x32xf32> to vector<8x32xbf16>
    %cst_21 = arith.constant dense<0.000000e+00> : vector<8x128xf32>
    %88 = tpu.matmul %87, %9, %cst_21 {dimension_numbers = #tpu.dot_dimension_numbers<[1], [0], [0], [1], [0, 0, 1, 1], [], []>} : vector<8x32xbf16>, vector<32x128xbf16>, vector<8x128xf32> -> vector<8x128xf32>
    %89 = vector.extract_strided_slice %7 {offsets = [24, 0], sizes = [8, 128], strides = [1, 1]} : vector<64x128xf32> to vector<8x128xf32>
    %90 = arith.addf %88, %89 : vector<8x128xf32>
    %91 = arith.negf %90 : vector<8x128xf32>
    %92 = math.exp %91 : vector<8x128xf32>
    %cst_22 = arith.constant 1.000000e+00 : f32
    %93 = vector.broadcast %cst_22 : f32 to vector<8x128xf32>
    %94 = arith.addf %93, %92 : vector<8x128xf32>
    %95 = arith.divf %93, %94 : vector<8x128xf32>
    %cst_23 = arith.constant 2.000000e+00 : f32
    %96 = vector.broadcast %cst_23 : f32 to vector<8x128xf32>
    %97 = arith.mulf %96, %95 : vector<8x128xf32>
    %cst_24 = arith.constant 1.000000e+00 : f32
    %98 = vector.broadcast %cst_24 : f32 to vector<8x128xf32>
    %99 = arith.subf %97, %98 : vector<8x128xf32>
    %100 = arith.select %15, %99, %95 : vector<8x128xi1>, vector<8x128xf32>
    %101 = vector.extract_strided_slice %100 {offsets = [0, 0], sizes = [8, 32], strides = [1, 1]} : vector<8x128xf32> to vector<8x32xf32>
    %102 = vector.extract_strided_slice %100 {offsets = [0, 32], sizes = [8, 32], strides = [1, 1]} : vector<8x128xf32> to vector<8x32xf32>
    %103 = vector.extract_strided_slice %100 {offsets = [0, 64], sizes = [8, 32], strides = [1, 1]} : vector<8x128xf32> to vector<8x32xf32>
    %104 = vector.extract_strided_slice %100 {offsets = [0, 96], sizes = [8, 32], strides = [1, 1]} : vector<8x128xf32> to vector<8x32xf32>
    %105 = arith.mulf %102, %84 : vector<8x32xf32>
    %106 = arith.mulf %101, %103 : vector<8x32xf32>
    %107 = arith.addf %105, %106 : vector<8x32xf32>
    %108 = math.tanh %107 : vector<8x32xf32>
    %109 = arith.mulf %104, %108 : vector<8x32xf32>
    %110 = arith.truncf %109 : vector<8x32xf32> to vector<8x32xbf16>
    %cst_25 = arith.constant dense<0.000000e+00> : vector<8x128xf32>
    %111 = tpu.matmul %110, %9, %cst_25 {dimension_numbers = #tpu.dot_dimension_numbers<[1], [0], [0], [1], [0, 0, 1, 1], [], []>} : vector<8x32xbf16>, vector<32x128xbf16>, vector<8x128xf32> -> vector<8x128xf32>
    %112 = vector.extract_strided_slice %7 {offsets = [32, 0], sizes = [8, 128], strides = [1, 1]} : vector<64x128xf32> to vector<8x128xf32>
    %113 = arith.addf %111, %112 : vector<8x128xf32>
    %114 = arith.negf %113 : vector<8x128xf32>
    %115 = math.exp %114 : vector<8x128xf32>
    %cst_26 = arith.constant 1.000000e+00 : f32
    %116 = vector.broadcast %cst_26 : f32 to vector<8x128xf32>
    %117 = arith.addf %116, %115 : vector<8x128xf32>
    %118 = arith.divf %116, %117 : vector<8x128xf32>
    %cst_27 = arith.constant 2.000000e+00 : f32
    %119 = vector.broadcast %cst_27 : f32 to vector<8x128xf32>
    %120 = arith.mulf %119, %118 : vector<8x128xf32>
    %cst_28 = arith.constant 1.000000e+00 : f32
    %121 = vector.broadcast %cst_28 : f32 to vector<8x128xf32>
    %122 = arith.subf %120, %121 : vector<8x128xf32>
    %123 = arith.select %15, %122, %118 : vector<8x128xi1>, vector<8x128xf32>
    %124 = vector.extract_strided_slice %123 {offsets = [0, 0], sizes = [8, 32], strides = [1, 1]} : vector<8x128xf32> to vector<8x32xf32>
    %125 = vector.extract_strided_slice %123 {offsets = [0, 32], sizes = [8, 32], strides = [1, 1]} : vector<8x128xf32> to vector<8x32xf32>
    %126 = vector.extract_strided_slice %123 {offsets = [0, 64], sizes = [8, 32], strides = [1, 1]} : vector<8x128xf32> to vector<8x32xf32>
    %127 = vector.extract_strided_slice %123 {offsets = [0, 96], sizes = [8, 32], strides = [1, 1]} : vector<8x128xf32> to vector<8x32xf32>
    %128 = arith.mulf %125, %107 : vector<8x32xf32>
    %129 = arith.mulf %124, %126 : vector<8x32xf32>
    %130 = arith.addf %128, %129 : vector<8x32xf32>
    %131 = math.tanh %130 : vector<8x32xf32>
    %132 = arith.mulf %127, %131 : vector<8x32xf32>
    %133 = arith.truncf %132 : vector<8x32xf32> to vector<8x32xbf16>
    %cst_29 = arith.constant dense<0.000000e+00> : vector<8x128xf32>
    %134 = tpu.matmul %133, %9, %cst_29 {dimension_numbers = #tpu.dot_dimension_numbers<[1], [0], [0], [1], [0, 0, 1, 1], [], []>} : vector<8x32xbf16>, vector<32x128xbf16>, vector<8x128xf32> -> vector<8x128xf32>
    %135 = vector.extract_strided_slice %7 {offsets = [40, 0], sizes = [8, 128], strides = [1, 1]} : vector<64x128xf32> to vector<8x128xf32>
    %136 = arith.addf %134, %135 : vector<8x128xf32>
    %137 = arith.negf %136 : vector<8x128xf32>
    %138 = math.exp %137 : vector<8x128xf32>
    %cst_30 = arith.constant 1.000000e+00 : f32
    %139 = vector.broadcast %cst_30 : f32 to vector<8x128xf32>
    %140 = arith.addf %139, %138 : vector<8x128xf32>
    %141 = arith.divf %139, %140 : vector<8x128xf32>
    %cst_31 = arith.constant 2.000000e+00 : f32
    %142 = vector.broadcast %cst_31 : f32 to vector<8x128xf32>
    %143 = arith.mulf %142, %141 : vector<8x128xf32>
    %cst_32 = arith.constant 1.000000e+00 : f32
    %144 = vector.broadcast %cst_32 : f32 to vector<8x128xf32>
    %145 = arith.subf %143, %144 : vector<8x128xf32>
    %146 = arith.select %15, %145, %141 : vector<8x128xi1>, vector<8x128xf32>
    %147 = vector.extract_strided_slice %146 {offsets = [0, 0], sizes = [8, 32], strides = [1, 1]} : vector<8x128xf32> to vector<8x32xf32>
    %148 = vector.extract_strided_slice %146 {offsets = [0, 32], sizes = [8, 32], strides = [1, 1]} : vector<8x128xf32> to vector<8x32xf32>
    %149 = vector.extract_strided_slice %146 {offsets = [0, 64], sizes = [8, 32], strides = [1, 1]} : vector<8x128xf32> to vector<8x32xf32>
    %150 = vector.extract_strided_slice %146 {offsets = [0, 96], sizes = [8, 32], strides = [1, 1]} : vector<8x128xf32> to vector<8x32xf32>
    %151 = arith.mulf %148, %130 : vector<8x32xf32>
    %152 = arith.mulf %147, %149 : vector<8x32xf32>
    %153 = arith.addf %151, %152 : vector<8x32xf32>
    %154 = math.tanh %153 : vector<8x32xf32>
    %155 = arith.mulf %150, %154 : vector<8x32xf32>
    %156 = arith.truncf %155 : vector<8x32xf32> to vector<8x32xbf16>
    %cst_33 = arith.constant dense<0.000000e+00> : vector<8x128xf32>
    %157 = tpu.matmul %156, %9, %cst_33 {dimension_numbers = #tpu.dot_dimension_numbers<[1], [0], [0], [1], [0, 0, 1, 1], [], []>} : vector<8x32xbf16>, vector<32x128xbf16>, vector<8x128xf32> -> vector<8x128xf32>
    %158 = vector.extract_strided_slice %7 {offsets = [48, 0], sizes = [8, 128], strides = [1, 1]} : vector<64x128xf32> to vector<8x128xf32>
    %159 = arith.addf %157, %158 : vector<8x128xf32>
    %160 = arith.negf %159 : vector<8x128xf32>
    %161 = math.exp %160 : vector<8x128xf32>
    %cst_34 = arith.constant 1.000000e+00 : f32
    %162 = vector.broadcast %cst_34 : f32 to vector<8x128xf32>
    %163 = arith.addf %162, %161 : vector<8x128xf32>
    %164 = arith.divf %162, %163 : vector<8x128xf32>
    %cst_35 = arith.constant 2.000000e+00 : f32
    %165 = vector.broadcast %cst_35 : f32 to vector<8x128xf32>
    %166 = arith.mulf %165, %164 : vector<8x128xf32>
    %cst_36 = arith.constant 1.000000e+00 : f32
    %167 = vector.broadcast %cst_36 : f32 to vector<8x128xf32>
    %168 = arith.subf %166, %167 : vector<8x128xf32>
    %169 = arith.select %15, %168, %164 : vector<8x128xi1>, vector<8x128xf32>
    %170 = vector.extract_strided_slice %169 {offsets = [0, 0], sizes = [8, 32], strides = [1, 1]} : vector<8x128xf32> to vector<8x32xf32>
    %171 = vector.extract_strided_slice %169 {offsets = [0, 32], sizes = [8, 32], strides = [1, 1]} : vector<8x128xf32> to vector<8x32xf32>
    %172 = vector.extract_strided_slice %169 {offsets = [0, 64], sizes = [8, 32], strides = [1, 1]} : vector<8x128xf32> to vector<8x32xf32>
    %173 = vector.extract_strided_slice %169 {offsets = [0, 96], sizes = [8, 32], strides = [1, 1]} : vector<8x128xf32> to vector<8x32xf32>
    %174 = arith.mulf %171, %153 : vector<8x32xf32>
    %175 = arith.mulf %170, %172 : vector<8x32xf32>
    %176 = arith.addf %174, %175 : vector<8x32xf32>
    %177 = math.tanh %176 : vector<8x32xf32>
    %178 = arith.mulf %173, %177 : vector<8x32xf32>
    %179 = arith.truncf %178 : vector<8x32xf32> to vector<8x32xbf16>
    %cst_37 = arith.constant dense<0.000000e+00> : vector<8x128xf32>
    %180 = tpu.matmul %179, %9, %cst_37 {dimension_numbers = #tpu.dot_dimension_numbers<[1], [0], [0], [1], [0, 0, 1, 1], [], []>} : vector<8x32xbf16>, vector<32x128xbf16>, vector<8x128xf32> -> vector<8x128xf32>
    %181 = vector.extract_strided_slice %7 {offsets = [56, 0], sizes = [8, 128], strides = [1, 1]} : vector<64x128xf32> to vector<8x128xf32>
    %182 = arith.addf %180, %181 : vector<8x128xf32>
    %183 = arith.negf %182 : vector<8x128xf32>
    %184 = math.exp %183 : vector<8x128xf32>
    %cst_38 = arith.constant 1.000000e+00 : f32
    %185 = vector.broadcast %cst_38 : f32 to vector<8x128xf32>
    %186 = arith.addf %185, %184 : vector<8x128xf32>
    %187 = arith.divf %185, %186 : vector<8x128xf32>
    %cst_39 = arith.constant 2.000000e+00 : f32
    %188 = vector.broadcast %cst_39 : f32 to vector<8x128xf32>
    %189 = arith.mulf %188, %187 : vector<8x128xf32>
    %cst_40 = arith.constant 1.000000e+00 : f32
    %190 = vector.broadcast %cst_40 : f32 to vector<8x128xf32>
    %191 = arith.subf %189, %190 : vector<8x128xf32>
    %192 = arith.select %15, %191, %187 : vector<8x128xi1>, vector<8x128xf32>
    %193 = vector.extract_strided_slice %192 {offsets = [0, 0], sizes = [8, 32], strides = [1, 1]} : vector<8x128xf32> to vector<8x32xf32>
    %194 = vector.extract_strided_slice %192 {offsets = [0, 32], sizes = [8, 32], strides = [1, 1]} : vector<8x128xf32> to vector<8x32xf32>
    %195 = vector.extract_strided_slice %192 {offsets = [0, 64], sizes = [8, 32], strides = [1, 1]} : vector<8x128xf32> to vector<8x32xf32>
    %196 = vector.extract_strided_slice %192 {offsets = [0, 96], sizes = [8, 32], strides = [1, 1]} : vector<8x128xf32> to vector<8x32xf32>
    %197 = arith.mulf %194, %176 : vector<8x32xf32>
    %198 = arith.mulf %193, %195 : vector<8x32xf32>
    %199 = arith.addf %197, %198 : vector<8x32xf32>
    %200 = math.tanh %199 : vector<8x32xf32>
    %201 = arith.mulf %196, %200 : vector<8x32xf32>
    %202 = math.tanh %201 : vector<8x32xf32>
    %cst_41 = arith.constant 0.000000e+00 : f32
    %203 = vector.broadcast %cst_41 : f32 to vector<8x32xf32>
    %204 = tpu.concatenate %201, %199, %202, %203 in 1 : vector<8x32xf32>, vector<8x32xf32>, vector<8x32xf32>, vector<8x32xf32> -> vector<8x128xf32>
    %c0_42 = arith.constant 0 : index
    %c0_43 = arith.constant 0 : index
    %205 = vector.load %arg4[%c0_42, %c0_43] : memref<8x128xf32, #tpu.memory_space<vmem>>, vector<8x128xf32>
    tpu.vector_store %arg4[%c0_42, %c0_43], %204 {strides = array<i32>} : memref<8x128xf32, #tpu.memory_space<vmem>>, vector<8x128xf32>,
    return
  }
}

</mosaic_0001>

<llo_original>
// kernel: tpu_custom_call.1
$region0: #{tpu_custom_call.1}
  #allocation0 [shape = 'u32[]', space=smem, size = 0x4, offset = 0x4, fixed_abs, tag = 'smem constant byte address 0x4 - core index']
  #allocation1 [shape = 'u32[144,128]{1,0:T(1,128)}', space=vmem, size = 0x12000, scoped, tag = 'internal scratch']
  %s0 = inlined_call_operand.vmem [shape: f32[64,16], index: 0, kind: input, shape index: {}]
  %s1 = inlined_call_operand.vmem [shape: f32[16,128], index: 1, kind: input, shape index: {}]
  %s2 = inlined_call_operand.vmem [shape: f32[32,128], index: 2, kind: input, shape index: {}]
  %s3 = inlined_call_operand.vmem [shape: f32[1,128], index: 3, kind: input, shape index: {}]
  %s4 = inlined_call_operand.hbm [shape: f32[8,128], index: 4, kind: output, shape index: {}]
  %s5 = sld [smem:[#allocation0]]
  $region26: #{tpu_custom_call.1} parent=0
    _
  %s7 = ssub.s32 1, %s5
  %s8 = scalar_select 0, %s7, %s5
  $region1: #{tpu_custom_call.1} parent=0
    #allocation2 [shape = 'u8[4096]{0}', space=vmem, size = 0x1000, scoped, tag = 'output window, operand 0, single buffered']
    #allocation3 [shape = 's32[1]{0}', space=sflag, size = 0x4, scoped, tag = 'scoped memory for tpu_custom_call.1']
    %9 = vsyncpa [#allocation3], 0
    // Predicated region
    $region2: #{tpu_custom_call.1} parent=1 // pred_check
      _
    $region3: #{tpu_custom_call.1} parent=1 // pred_check_branch
      %11 = sbr.rel (0) target = $region5
    $region4: #{tpu_custom_call.1} parent=1 // pred_region
      _
    $region5: #{tpu_custom_call.1} parent=1 // pred_fallthru
      _
    // Predicated region
    $region6: #{tpu_custom_call.1} parent=1 // pred_check
      _
    $region7: #{tpu_custom_call.1} parent=1 // pred_check_branch
      %13 = sbr.rel (0) target = $region9
    $region8: #{tpu_custom_call.1} parent=1 // pred_region
      _
    $region9: #{tpu_custom_call.1} parent=1 // pred_fallthru
      _
    // Predicated region
    $region10: #{tpu_custom_call.1} parent=1 // pred_check
      _
    $region11: #{tpu_custom_call.1} parent=1 // pred_check_branch
      %15 = sbr.rel (0) target = $region13
    $region12: #{tpu_custom_call.1} parent=1 // pred_region
      _
    $region13: #{tpu_custom_call.1} parent=1 // pred_fallthru
      _
    // Predicated region
    $region14: #{tpu_custom_call.1} parent=1 // pred_check
      _
    $region15: #{tpu_custom_call.1} parent=1 // pred_check_branch
      %17 = sbr.rel (0) target = $region17
    $region16: #{tpu_custom_call.1} parent=1 // pred_region
      _
    $region17: #{tpu_custom_call.1} parent=1 // pred_fallthru
      _
    %v19 = vld [vmem:[%s0] sm:$0xff]
    %v20 = vld [vmem:[%s0 + $0x8] sm:$0xff]
    %v21 = vld [vmem:[%s0 + $0x10] sm:$0xff]
    %v22 = vld [vmem:[%s0 + $0x18] sm:$0xff]
    %v23 = vld [vmem:[%s0 + $0x20] sm:$0xff]
    %v24 = vld [vmem:[%s0 + $0x28] sm:$0xff]
    %v25 = vld [vmem:[%s0 + $0x30] sm:$0xff]
    %v26 = vld [vmem:[%s0 + $0x38] sm:$0xff]
    %v27 = vpack.c.bf16 %v20, %v19
    %v28 = vpack.c.bf16 %v22, %v21
    %v29 = vpack.c.bf16 %v24, %v23
    %v30 = vpack.c.bf16 %v26, %v25
    %v31 = vld [vmem:[%s1] sm:$0xff]
    %v32 = vld [vmem:[%s1 + $0x8] sm:$0xff]
    %v33 = vpack.c.bf16 %v32, %v31
    %v34 = vld [vmem:[%s3] sm:$0x1]
    %v36 = vlaneseq
    %v37 = vshrl.u32 %v36, 7
    %v38 = vsub.s32 0, %v37
    %v39 = vrot.slane %v34, %v38
    %vm41 = vcmask 130048
    %v43 = vsel %vm41, %v27, 0
    %v46 = vsel %vm41, %v28, 0
    %v49 = vsel %vm41, %v29, 0
    %v52 = vsel %vm41, %v30, 0
    %54 = vmatprep.subr.bf16.mxu0 0
    %55 = vmatpush1.bf16.msra.mxu0 %v33
    %56 = vmatprep.subr.bf16.mxu0 0
    %57 = vmatpush1.bf16.msra.mxu0 0
    %58 = vmatprep.subr.bf16.mxu0 0
    %59 = vmatpush1.bf16.msra.mxu0 0
    %60 = vmatprep.subr.bf16.mxu0 0
    %61 = vmatpush1.bf16.msra.mxu0 0
    %62 = vmatprep.subr.bf16.mxu0 0
    %63 = vmatpush1.bf16.msra.mxu0 0
    %64 = vmatprep.subr.bf16.mxu0 0
    %65 = vmatpush1.bf16.msra.mxu0 0
    %66 = vmatprep.subr.bf16.mxu0 0
    %67 = vmatpush1.bf16.msra.mxu0 0
    %68 = vmatprep.subr.bf16.mxu0 0
    %69 = vmatpush1.bf16.msra.mxu0 0
    %70 = vmatprep.subr.bf16.mxu0 0
    %71 = vmatpush1.bf16.msra.mxu0 0
    %72 = vmatprep.subr.bf16.mxu0 0
    %73 = vmatpush1.bf16.msra.mxu0 0
    %74 = vmatprep.subr.bf16.mxu0 0
    %75 = vmatpush1.bf16.msra.mxu0 0
    %76 = vmatprep.subr.bf16.mxu0 0
    %77 = vmatpush1.bf16.msra.mxu0 0
    %78 = vmatprep.subr.bf16.mxu0 0
    %79 = vmatpush1.bf16.msra.mxu0 0
    %80 = vmatprep.subr.bf16.mxu0 0
    %81 = vmatpush1.bf16.msra.mxu0 0
    %82 = vmatprep.subr.bf16.mxu0 0
    %83 = vmatpush1.bf16.msra.mxu0 0
    %84 = vmatprep.subr.bf16.mxu0 0
    %85 = vmatpush1.bf16.msra.mxu0 0
    %86 = vmatprep.mubr.bf16.mxu0 0
    %87 = vmatmul.mubr.bf16.gmra.mrb[0].mxu0 %v43
    %v88 = vpop.f32.mrb[0].mxu0
    %v89 = vadd.f32 %v39, %v88
    %v90 = vpop.f32.mrb[0].mxu0
    %v91 = vpop.f32.mrb[0].mxu0
    %v92 = vadd.f32 %v39, %v91
    %v93 = vpop.f32.mrb[0].mxu0
    %94 = vmatprep.mubr.bf16.mxu0 0
    %95 = vmatmul.mubr.bf16.gmra.mrb[0].mxu0 %v46
    %v96 = vpop.f32.mrb[0].mxu0
    %v97 = vadd.f32 %v39, %v96
    %v98 = vpop.f32.mrb[0].mxu0
    %v99 = vpop.f32.mrb[0].mxu0
    %v100 = vadd.f32 %v39, %v99
    %v101 = vpop.f32.mrb[0].mxu0
    %102 = vmatprep.mubr.bf16.mxu0 0
    %103 = vmatmul.mubr.bf16.gmra.mrb[0].mxu0 %v49
    %v104 = vpop.f32.mrb[0].mxu0
    %v105 = vadd.f32 %v39, %v104
    %v106 = vpop.f32.mrb[0].mxu0
    %v107 = vpop.f32.mrb[0].mxu0
    %v108 = vadd.f32 %v39, %v107
    %v109 = vpop.f32.mrb[0].mxu0
    %110 = vmatprep.mubr.bf16.mxu0 0
    %111 = vmatmul.mubr.bf16.gmra.mrb[0].mxu0 %v52
    %v112 = vpop.f32.mrb[0].mxu0
    %v113 = vadd.f32 %v39, %v112
    %v114 = vpop.f32.mrb[0].mxu0
    %v115 = vpop.f32.mrb[0].mxu0
    %v116 = vadd.f32 %v39, %v115
    %v117 = vpop.f32.mrb[0].mxu0
    %118 = vdwg.mxu0
    %v119 = vld [vmem:[%s2] sm:$0xff]
    %v120 = vld [vmem:[%s2 + $0x8] sm:$0xff]
    %v121 = vld [vmem:[%s2 + $0x10] sm:$0xff]
    %v122 = vld [vmem:[%s2 + $0x18] sm:$0xff]
    %v123 = vpack.c.bf16 %v120, %v119
    %v124 = vpack.c.bf16 %v122, %v121
    %v125 = vlaneseq
    %v126 = vand.u32 %v125, 127
    %vm127 = vcmp.ge.s32.totalorder %v126, 64
    %vm128 = vcmp.lt.s32.totalorder %v126, 96
    %vm129 = vmand %vm127, %vm128
    %vm130 = vcmask 261120
    %v132 = vsel %vm130, 0, 0
    %134 = vmatprep.subr.bf16.mxu0 0
    %135 = vmatpush1.bf16.msra.mxu0 %v123
    %136 = vmatprep.subr.bf16.mxu0 0
    %137 = vmatpush1.bf16.msra.mxu0 %v124
    %138 = vmatprep.subr.bf16.mxu0 0
    %139 = vmatpush1.bf16.msra.mxu0 0
    %140 = vmatprep.subr.bf16.mxu0 0
    %141 = vmatpush1.bf16.msra.mxu0 0
    %142 = vmatprep.subr.bf16.mxu0 0
    %143 = vmatpush1.bf16.msra.mxu0 0
    %144 = vmatprep.subr.bf16.mxu0 0
    %145 = vmatpush1.bf16.msra.mxu0 0
    %146 = vmatprep.subr.bf16.mxu0 0
    %147 = vmatpush1.bf16.msra.mxu0 0
    %148 = vmatprep.subr.bf16.mxu0 0
    %149 = vmatpush1.bf16.msra.mxu0 0
    %150 = vmatprep.subr.bf16.mxu0 0
    %151 = vmatpush1.bf16.msra.mxu0 0
    %152 = vmatprep.subr.bf16.mxu0 0
    %153 = vmatpush1.bf16.msra.mxu0 0
    %154 = vmatprep.subr.bf16.mxu0 0
    %155 = vmatpush1.bf16.msra.mxu0 0
    %156 = vmatprep.subr.bf16.mxu0 0
    %157 = vmatpush1.bf16.msra.mxu0 0
    %158 = vmatprep.subr.bf16.mxu0 0
    %159 = vmatpush1.bf16.msra.mxu0 0
    %160 = vmatprep.subr.bf16.mxu0 0
    %161 = vmatpush1.bf16.msra.mxu0 0
    %162 = vmatprep.subr.bf16.mxu0 0
    %163 = vmatpush1.bf16.msra.mxu0 0
    %164 = vmatprep.subr.bf16.mxu0 0
    %165 = vmatpush1.bf16.msra.mxu0 0
    %166 = vmatprep.mubr.bf16.mxu0 0
    %167 = vmatmul.mubr.bf16.gmra.mrb[0].mxu0 %v132
    %v168 = vpop.f32.mrb[0].mxu0
    %v169 = vadd.f32 %v89, %v168
    %v170 = vpop.f32.mrb[0].mxu0
    %v171 = vpop.f32.mrb[0].mxu0
    %v172 = vpop.f32.mrb[0].mxu0
    %173 = vdwg.mxu0
    %v174 = vxor.u32 %v169, 2147483648
    %v175 = vmul.f32 %v174, 1.442695
    %v176 = vpow.pop %v175
    %v177 = vadd.f32 %v176, 1.0
    %v178 = vrcp.pop %v177
    %v179 = vmul.f32 1.0, %v178
    %v180 = vmul.f32 %v179, 2.0
    %v181 = vsub.f32 %v180, 1.0
    %v182 = vsel %vm129, %v181, %v179
    %v183 = vmul.f32 %v182, 0.0
    %185 = vrot.lane.b32.xlu0 %v182, 64
    %v186 = vpop.permute.xlu0 %185
    %v188 = vmul.f32 %v182, %v186
    %190 = vrot.lane.b32.xlu0 %v188, 32
    %v191 = vpop.permute.xlu0 %190
    %v193 = vadd.f32 %v183, %v191
    %v194 = vtanh.pop %v193
    %196 = vrot.lane.b32.xlu0 %v194, 64
    %v197 = vpop.permute.xlu0 %196
    %v199 = vmul.f32 %v182, %v197
    %v200 = vpack.c.bf16 %v199, %v199
    %202 = vrot.lane.b32.xlu0 %v200, 32
    %v203 = vpop.permute.xlu0 %202
    %v205 = vsel %vm130, %v203, 0
    %207 = vmatprep.subr.bf16.mxu0 0
    %208 = vmatpush1.bf16.msra.mxu0 %v123
    %209 = vmatprep.subr.bf16.mxu0 0
    %210 = vmatpush1.bf16.msra.mxu0 %v124
    %211 = vmatprep.subr.bf16.mxu0 0
    %212 = vmatpush1.bf16.msra.mxu0 0
    %213 = vmatprep.subr.bf16.mxu0 0
    %214 = vmatpush1.bf16.msra.mxu0 0
    %215 = vmatprep.subr.bf16.mxu0 0
    %216 = vmatpush1.bf16.msra.mxu0 0
    %217 = vmatprep.subr.bf16.mxu0 0
    %218 = vmatpush1.bf16.msra.mxu0 0
    %219 = vmatprep.subr.bf16.mxu0 0
    %220 = vmatpush1.bf16.msra.mxu0 0
    %221 = vmatprep.subr.bf16.mxu0 0
    %222 = vmatpush1.bf16.msra.mxu0 0
    %223 = vmatprep.subr.bf16.mxu0 0
    %224 = vmatpush1.bf16.msra.mxu0 0
    %225 = vmatprep.subr.bf16.mxu0 0
    %226 = vmatpush1.bf16.msra.mxu0 0
    %227 = vmatprep.subr.bf16.mxu0 0
    %228 = vmatpush1.bf16.msra.mxu0 0
    %229 = vmatprep.subr.bf16.mxu0 0
    %230 = vmatpush1.bf16.msra.mxu0 0
    %231 = vmatprep.subr.bf16.mxu0 0
    %232 = vmatpush1.bf16.msra.mxu0 0
    %233 = vmatprep.subr.bf16.mxu0 0
    %234 = vmatpush1.bf16.msra.mxu0 0
    %235 = vmatprep.subr.bf16.mxu0 0
    %236 = vmatpush1.bf16.msra.mxu0 0
    %237 = vmatprep.subr.bf16.mxu0 0
    %238 = vmatpush1.bf16.msra.mxu0 0
    %239 = vmatprep.mubr.bf16.mxu0 0
    %240 = vmatmul.mubr.bf16.gmra.mrb[0].mxu0 %v205
    %v241 = vpop.f32.mrb[0].mxu0
    %v242 = vadd.f32 %v92, %v241
    %v243 = vpop.f32.mrb[0].mxu0
    %v244 = vpop.f32.mrb[0].mxu0
    %v245 = vpop.f32.mrb[0].mxu0
    %246 = vdwg.mxu0
    %v247 = vxor.u32 %v242, 2147483648
    %v248 = vmul.f32 %v247, 1.442695
    %v249 = vpow.pop %v248
    %v250 = vadd.f32 %v249, 1.0
    %v251 = vrcp.pop %v250
    %v252 = vmul.f32 1.0, %v251
    %v253 = vmul.f32 %v252, 2.0
    %v254 = vsub.f32 %v253, 1.0
    %v255 = vsel %vm129, %v254, %v252
    %v256 = vmul.f32 %v255, %v193
    %258 = vrot.lane.b32.xlu0 %v255, 64
    %v259 = vpop.permute.xlu0 %258
    %v261 = vmul.f32 %v255, %v259
    %263 = vrot.lane.b32.xlu0 %v261, 32
    %v264 = vpop.permute.xlu0 %263
    %v266 = vadd.f32 %v256, %v264
    %v267 = vtanh.pop %v266
    %269 = vrot.lane.b32.xlu0 %v267, 64
    %v270 = vpop.permute.xlu0 %269
    %v272 = vmul.f32 %v255, %v270
    %v273 = vpack.c.bf16 %v272, %v272
    %275 = vrot.lane.b32.xlu0 %v273, 32
    %v276 = vpop.permute.xlu0 %275
    %v278 = vsel %vm130, %v276, 0
    %280 = vmatprep.subr.bf16.mxu0 0
    %281 = vmatpush1.bf16.msra.mxu0 %v123
    %282 = vmatprep.subr.bf16.mxu0 0
    %283 = vmatpush1.bf16.msra.mxu0 %v124
    %284 = vmatprep.subr.bf16.mxu0 0
    %285 = vmatpush1.bf16.msra.mxu0 0
    %286 = vmatprep.subr.bf16.mxu0 0
    %287 = vmatpush1.bf16.msra.mxu0 0
    %288 = vmatprep.subr.bf16.mxu0 0
    %289 = vmatpush1.bf16.msra.mxu0 0
    %290 = vmatprep.subr.bf16.mxu0 0
    %291 = vmatpush1.bf16.msra.mxu0 0
    %292 = vmatprep.subr.bf16.mxu0 0
    %293 = vmatpush1.bf16.msra.mxu0 0
    %294 = vmatprep.subr.bf16.mxu0 0
    %295 = vmatpush1.bf16.msra.mxu0 0
    %296 = vmatprep.subr.bf16.mxu0 0
    %297 = vmatpush1.bf16.msra.mxu0 0
    %298 = vmatprep.subr.bf16.mxu0 0
    %299 = vmatpush1.bf16.msra.mxu0 0
    %300 = vmatprep.subr.bf16.mxu0 0
    %301 = vmatpush1.bf16.msra.mxu0 0
    %302 = vmatprep.subr.bf16.mxu0 0
    %303 = vmatpush1.bf16.msra.mxu0 0
    %304 = vmatprep.subr.bf16.mxu0 0
    %305 = vmatpush1.bf16.msra.mxu0 0
    %306 = vmatprep.subr.bf16.mxu0 0
    %307 = vmatpush1.bf16.msra.mxu0 0
    %308 = vmatprep.subr.bf16.mxu0 0
    %309 = vmatpush1.bf16.msra.mxu0 0
    %310 = vmatprep.subr.bf16.mxu0 0
    %311 = vmatpush1.bf16.msra.mxu0 0
    %312 = vmatprep.mubr.bf16.mxu0 0
    %313 = vmatmul.mubr.bf16.gmra.mrb[0].mxu0 %v278
    %v314 = vpop.f32.mrb[0].mxu0
    %v315 = vadd.f32 %v97, %v314
    %v316 = vpop.f32.mrb[0].mxu0
    %v317 = vpop.f32.mrb[0].mxu0
    %v318 = vpop.f32.mrb[0].mxu0
    %319 = vdwg.mxu0
    %v320 = vxor.u32 %v315, 2147483648
    %v321 = vmul.f32 %v320, 1.442695
    %v322 = vpow.pop %v321
    %v323 = vadd.f32 %v322, 1.0
    %v324 = vrcp.pop %v323
    %v325 = vmul.f32 1.0, %v324
    %v326 = vmul.f32 %v325, 2.0
    %v327 = vsub.f32 %v326, 1.0
    %v328 = vsel %vm129, %v327, %v325
    %v329 = vmul.f32 %v328, %v266
    %331 = vrot.lane.b32.xlu0 %v328, 64
    %v332 = vpop.permute.xlu0 %331
    %v334 = vmul.f32 %v328, %v332
    %336 = vrot.lane.b32.xlu0 %v334, 32
    %v337 = vpop.permute.xlu0 %336
    %v339 = vadd.f32 %v329, %v337
    %v340 = vtanh.pop %v339
    %342 = vrot.lane.b32.xlu0 %v340, 64
    %v343 = vpop.permute.xlu0 %342
    %v345 = vmul.f32 %v328, %v343
    %v346 = vpack.c.bf16 %v345, %v345
    %348 = vrot.lane.b32.xlu0 %v346, 32
    %v349 = vpop.permute.xlu0 %348
    %v351 = vsel %vm130, %v349, 0
    %353 = vmatprep.subr.bf16.mxu0 0
    %354 = vmatpush1.bf16.msra.mxu0 %v123
    %355 = vmatprep.subr.bf16.mxu0 0
    %356 = vmatpush1.bf16.msra.mxu0 %v124
    %357 = vmatprep.subr.bf16.mxu0 0
    %358 = vmatpush1.bf16.msra.mxu0 0
    %359 = vmatprep.subr.bf16.mxu0 0
    %360 = vmatpush1.bf16.msra.mxu0 0
    %361 = vmatprep.subr.bf16.mxu0 0
    %362 = vmatpush1.bf16.msra.mxu0 0
    %363 = vmatprep.subr.bf16.mxu0 0
    %364 = vmatpush1.bf16.msra.mxu0 0
    %365 = vmatprep.subr.bf16.mxu0 0
    %366 = vmatpush1.bf16.msra.mxu0 0
    %367 = vmatprep.subr.bf16.mxu0 0
    %368 = vmatpush1.bf16.msra.mxu0 0
    %369 = vmatprep.subr.bf16.mxu0 0
    %370 = vmatpush1.bf16.msra.mxu0 0
    %371 = vmatprep.subr.bf16.mxu0 0
    %372 = vmatpush1.bf16.msra.mxu0 0
    %373 = vmatprep.subr.bf16.mxu0 0
    %374 = vmatpush1.bf16.msra.mxu0 0
    %375 = vmatprep.subr.bf16.mxu0 0
    %376 = vmatpush1.bf16.msra.mxu0 0
    %377 = vmatprep.subr.bf16.mxu0 0
    %378 = vmatpush1.bf16.msra.mxu0 0
    %379 = vmatprep.subr.bf16.mxu0 0
    %380 = vmatpush1.bf16.msra.mxu0 0
    %381 = vmatprep.subr.bf16.mxu0 0
    %382 = vmatpush1.bf16.msra.mxu0 0
    %383 = vmatprep.subr.bf16.mxu0 0
    %384 = vmatpush1.bf16.msra.mxu0 0
    %385 = vmatprep.mubr.bf16.mxu0 0
    %386 = vmatmul.mubr.bf16.gmra.mrb[0].mxu0 %v351
    %v387 = vpop.f32.mrb[0].mxu0
    %v388 = vadd.f32 %v100, %v387
    %v389 = vpop.f32.mrb[0].mxu0
    %v390 = vpop.f32.mrb[0].mxu0
    %v391 = vpop.f32.mrb[0].mxu0
    %392 = vdwg.mxu0
    %v393 = vxor.u32 %v388, 2147483648
    %v394 = vmul.f32 %v393, 1.442695
    %v395 = vpow.pop %v394
    %v396 = vadd.f32 %v395, 1.0
    %v397 = vrcp.pop %v396
    %v398 = vmul.f32 1.0, %v397
    %v399 = vmul.f32 %v398, 2.0
    %v400 = vsub.f32 %v399, 1.0
    %v401 = vsel %vm129, %v400, %v398
    %v402 = vmul.f32 %v401, %v339
    %404 = vrot.lane.b32.xlu0 %v401, 64
    %v405 = vpop.permute.xlu0 %404
    %v407 = vmul.f32 %v401, %v405
    %409 = vrot.lane.b32.xlu0 %v407, 32
    %v410 = vpop.permute.xlu0 %409
    %v412 = vadd.f32 %v402, %v410
    %v413 = vtanh.pop %v412
    %415 = vrot.lane.b32.xlu0 %v413, 64
    %v416 = vpop.permute.xlu0 %415
    %v418 = vmul.f32 %v401, %v416
    %v419 = vpack.c.bf16 %v418, %v418
    %421 = vrot.lane.b32.xlu0 %v419, 32
    %v422 = vpop.permute.xlu0 %421
    %v424 = vsel %vm130, %v422, 0
    %426 = vmatprep.subr.bf16.mxu0 0
    %427 = vmatpush1.bf16.msra.mxu0 %v123
    %428 = vmatprep.subr.bf16.mxu0 0
    %429 = vmatpush1.bf16.msra.mxu0 %v124
    %430 = vmatprep.subr.bf16.mxu0 0
    %431 = vmatpush1.bf16.msra.mxu0 0
    %432 = vmatprep.subr.bf16.mxu0 0
    %433 = vmatpush1.bf16.msra.mxu0 0
    %434 = vmatprep.subr.bf16.mxu0 0
    %435 = vmatpush1.bf16.msra.mxu0 0
    %436 = vmatprep.subr.bf16.mxu0 0
    %437 = vmatpush1.bf16.msra.mxu0 0
    %438 = vmatprep.subr.bf16.mxu0 0
    %439 = vmatpush1.bf16.msra.mxu0 0
    %440 = vmatprep.subr.bf16.mxu0 0
    %441 = vmatpush1.bf16.msra.mxu0 0
    %442 = vmatprep.subr.bf16.mxu0 0
    %443 = vmatpush1.bf16.msra.mxu0 0
    %444 = vmatprep.subr.bf16.mxu0 0
    %445 = vmatpush1.bf16.msra.mxu0 0
    %446 = vmatprep.subr.bf16.mxu0 0
    %447 = vmatpush1.bf16.msra.mxu0 0
    %448 = vmatprep.subr.bf16.mxu0 0
    %449 = vmatpush1.bf16.msra.mxu0 0
    %450 = vmatprep.subr.bf16.mxu0 0
    %451 = vmatpush1.bf16.msra.mxu0 0
    %452 = vmatprep.subr.bf16.mxu0 0
    %453 = vmatpush1.bf16.msra.mxu0 0
    %454 = vmatprep.subr.bf16.mxu0 0
    %455 = vmatpush1.bf16.msra.mxu0 0
    %456 = vmatprep.subr.bf16.mxu0 0
    %457 = vmatpush1.bf16.msra.mxu0 0
    %458 = vmatprep.mubr.bf16.mxu0 0
    %459 = vmatmul.mubr.bf16.gmra.mrb[0].mxu0 %v424
    %v460 = vpop.f32.mrb[0].mxu0
    %v461 = vadd.f32 %v105, %v460
    %v462 = vpop.f32.mrb[0].mxu0
    %v463 = vpop.f32.mrb[0].mxu0
    %v464 = vpop.f32.mrb[0].mxu0
    %465 = vdwg.mxu0
    %v466 = vxor.u32 %v461, 2147483648
    %v467 = vmul.f32 %v466, 1.442695
    %v468 = vpow.pop %v467
    %v469 = vadd.f32 %v468, 1.0
    %v470 = vrcp.pop %v469
    %v471 = vmul.f32 1.0, %v470
    %v472 = vmul.f32 %v471, 2.0
    %v473 = vsub.f32 %v472, 1.0
    %v474 = vsel %vm129, %v473, %v471
    %v475 = vmul.f32 %v474, %v412
    %477 = vrot.lane.b32.xlu0 %v474, 64
    %v478 = vpop.permute.xlu0 %477
    %v480 = vmul.f32 %v474, %v478
    %482 = vrot.lane.b32.xlu0 %v480, 32
    %v483 = vpop.permute.xlu0 %482
    %v485 = vadd.f32 %v475, %v483
    %v486 = vtanh.pop %v485
    %488 = vrot.lane.b32.xlu0 %v486, 64
    %v489 = vpop.permute.xlu0 %488
    %v491 = vmul.f32 %v474, %v489
    %v492 = vpack.c.bf16 %v491, %v491
    %494 = vrot.lane.b32.xlu0 %v492, 32
    %v495 = vpop.permute.xlu0 %494
    %v497 = vsel %vm130, %v495, 0
    %499 = vmatprep.subr.bf16.mxu0 0
    %500 = vmatpush1.bf16.msra.mxu0 %v123
    %501 = vmatprep.subr.bf16.mxu0 0
    %502 = vmatpush1.bf16.msra.mxu0 %v124
    %503 = vmatprep.subr.bf16.mxu0 0
    %504 = vmatpush1.bf16.msra.mxu0 0
    %505 = vmatprep.subr.bf16.mxu0 0
    %506 = vmatpush1.bf16.msra.mxu0 0
    %507 = vmatprep.subr.bf16.mxu0 0
    %508 = vmatpush1.bf16.msra.mxu0 0
    %509 = vmatprep.subr.bf16.mxu0 0
    %510 = vmatpush1.bf16.msra.mxu0 0
    %511 = vmatprep.subr.bf16.mxu0 0
    %512 = vmatpush1.bf16.msra.mxu0 0
    %513 = vmatprep.subr.bf16.mxu0 0
    %514 = vmatpush1.bf16.msra.mxu0 0
    %515 = vmatprep.subr.bf16.mxu0 0
    %516 = vmatpush1.bf16.msra.mxu0 0
    %517 = vmatprep.subr.bf16.mxu0 0
    %518 = vmatpush1.bf16.msra.mxu0 0
    %519 = vmatprep.subr.bf16.mxu0 0
    %520 = vmatpush1.bf16.msra.mxu0 0
    %521 = vmatprep.subr.bf16.mxu0 0
    %522 = vmatpush1.bf16.msra.mxu0 0
    %523 = vmatprep.subr.bf16.mxu0 0
    %524 = vmatpush1.bf16.msra.mxu0 0
    %525 = vmatprep.subr.bf16.mxu0 0
    %526 = vmatpush1.bf16.msra.mxu0 0
    %527 = vmatprep.subr.bf16.mxu0 0
    %528 = vmatpush1.bf16.msra.mxu0 0
    %529 = vmatprep.subr.bf16.mxu0 0
    %530 = vmatpush1.bf16.msra.mxu0 0
    %531 = vmatprep.mubr.bf16.mxu0 0
    %532 = vmatmul.mubr.bf16.gmra.mrb[0].mxu0 %v497
    %v533 = vpop.f32.mrb[0].mxu0
    %v534 = vadd.f32 %v108, %v533
    %v535 = vpop.f32.mrb[0].mxu0
    %v536 = vpop.f32.mrb[0].mxu0
    %v537 = vpop.f32.mrb[0].mxu0
    %538 = vdwg.mxu0
    %v539 = vxor.u32 %v534, 2147483648
    %v540 = vmul.f32 %v539, 1.442695
    %v541 = vpow.pop %v540
    %v542 = vadd.f32 %v541, 1.0
    %v543 = vrcp.pop %v542
    %v544 = vmul.f32 1.0, %v543
    %v545 = vmul.f32 %v544, 2.0
    %v546 = vsub.f32 %v545, 1.0
    %v547 = vsel %vm129, %v546, %v544
    %v548 = vmul.f32 %v547, %v485
    %550 = vrot.lane.b32.xlu0 %v547, 64
    %v551 = vpop.permute.xlu0 %550
    %v553 = vmul.f32 %v547, %v551
    %555 = vrot.lane.b32.xlu0 %v553, 32
    %v556 = vpop.permute.xlu0 %555
    %v558 = vadd.f32 %v548, %v556
    %v559 = vtanh.pop %v558
    %561 = vrot.lane.b32.xlu0 %v559, 64
    %v562 = vpop.permute.xlu0 %561
    %v564 = vmul.f32 %v547, %v562
    %v565 = vpack.c.bf16 %v564, %v564
    %567 = vrot.lane.b32.xlu0 %v565, 32
    %v568 = vpop.permute.xlu0 %567
    %v570 = vsel %vm130, %v568, 0
    %572 = vmatprep.subr.bf16.mxu0 0
    %573 = vmatpush1.bf16.msra.mxu0 %v123
    %574 = vmatprep.subr.bf16.mxu0 0
    %575 = vmatpush1.bf16.msra.mxu0 %v124
    %576 = vmatprep.subr.bf16.mxu0 0
    %577 = vmatpush1.bf16.msra.mxu0 0
    %578 = vmatprep.subr.bf16.mxu0 0
    %579 = vmatpush1.bf16.msra.mxu0 0
    %580 = vmatprep.subr.bf16.mxu0 0
    %581 = vmatpush1.bf16.msra.mxu0 0
    %582 = vmatprep.subr.bf16.mxu0 0
    %583 = vmatpush1.bf16.msra.mxu0 0
    %584 = vmatprep.subr.bf16.mxu0 0
    %585 = vmatpush1.bf16.msra.mxu0 0
    %586 = vmatprep.subr.bf16.mxu0 0
    %587 = vmatpush1.bf16.msra.mxu0 0
    %588 = vmatprep.subr.bf16.mxu0 0
    %589 = vmatpush1.bf16.msra.mxu0 0
    %590 = vmatprep.subr.bf16.mxu0 0
    %591 = vmatpush1.bf16.msra.mxu0 0
    %592 = vmatprep.subr.bf16.mxu0 0
    %593 = vmatpush1.bf16.msra.mxu0 0
    %594 = vmatprep.subr.bf16.mxu0 0
    %595 = vmatpush1.bf16.msra.mxu0 0
    %596 = vmatprep.subr.bf16.mxu0 0
    %597 = vmatpush1.bf16.msra.mxu0 0
    %598 = vmatprep.subr.bf16.mxu0 0
    %599 = vmatpush1.bf16.msra.mxu0 0
    %600 = vmatprep.subr.bf16.mxu0 0
    %601 = vmatpush1.bf16.msra.mxu0 0
    %602 = vmatprep.subr.bf16.mxu0 0
    %603 = vmatpush1.bf16.msra.mxu0 0
    %604 = vmatprep.mubr.bf16.mxu0 0
    %605 = vmatmul.mubr.bf16.gmra.mrb[0].mxu0 %v570
    %v606 = vpop.f32.mrb[0].mxu0
    %v607 = vadd.f32 %v113, %v606
    %v608 = vpop.f32.mrb[0].mxu0
    %v609 = vpop.f32.mrb[0].mxu0
    %v610 = vpop.f32.mrb[0].mxu0
    %611 = vdwg.mxu0
    %v612 = vxor.u32 %v607, 2147483648
    %v613 = vmul.f32 %v612, 1.442695
    %v614 = vpow.pop %v613
    %v615 = vadd.f32 %v614, 1.0
    %v616 = vrcp.pop %v615
    %v617 = vmul.f32 1.0, %v616
    %v618 = vmul.f32 %v617, 2.0
    %v619 = vsub.f32 %v618, 1.0
    %v620 = vsel %vm129, %v619, %v617
    %v621 = vmul.f32 %v620, %v558
    %623 = vrot.lane.b32.xlu0 %v620, 64
    %v624 = vpop.permute.xlu0 %623
    %v626 = vmul.f32 %v620, %v624
    %628 = vrot.lane.b32.xlu0 %v626, 32
    %v629 = vpop.permute.xlu0 %628
    %v631 = vadd.f32 %v621, %v629
    %v632 = vtanh.pop %v631
    %634 = vrot.lane.b32.xlu0 %v632, 64
    %v635 = vpop.permute.xlu0 %634
    %v637 = vmul.f32 %v620, %v635
    %v638 = vpack.c.bf16 %v637, %v637
    %640 = vrot.lane.b32.xlu0 %v638, 32
    %v641 = vpop.permute.xlu0 %640
    %v643 = vsel %vm130, %v641, 0
    %645 = vmatprep.subr.bf16.mxu0 0
    %646 = vmatpush1.bf16.msra.mxu0 %v123
    %647 = vmatprep.subr.bf16.mxu0 0
    %648 = vmatpush1.bf16.msra.mxu0 %v124
    %649 = vmatprep.subr.bf16.mxu0 0
    %650 = vmatpush1.bf16.msra.mxu0 0
    %651 = vmatprep.subr.bf16.mxu0 0
    %652 = vmatpush1.bf16.msra.mxu0 0
    %653 = vmatprep.subr.bf16.mxu0 0
    %654 = vmatpush1.bf16.msra.mxu0 0
    %655 = vmatprep.subr.bf16.mxu0 0
    %656 = vmatpush1.bf16.msra.mxu0 0
    %657 = vmatprep.subr.bf16.mxu0 0
    %658 = vmatpush1.bf16.msra.mxu0 0
    %659 = vmatprep.subr.bf16.mxu0 0
    %660 = vmatpush1.bf16.msra.mxu0 0
    %661 = vmatprep.subr.bf16.mxu0 0
    %662 = vmatpush1.bf16.msra.mxu0 0
    %663 = vmatprep.subr.bf16.mxu0 0
    %664 = vmatpush1.bf16.msra.mxu0 0
    %665 = vmatprep.subr.bf16.mxu0 0
    %666 = vmatpush1.bf16.msra.mxu0 0
    %667 = vmatprep.subr.bf16.mxu0 0
    %668 = vmatpush1.bf16.msra.mxu0 0
    %669 = vmatprep.subr.bf16.mxu0 0
    %670 = vmatpush1.bf16.msra.mxu0 0
    %671 = vmatprep.subr.bf16.mxu0 0
    %672 = vmatpush1.bf16.msra.mxu0 0
    %673 = vmatprep.subr.bf16.mxu0 0
    %674 = vmatpush1.bf16.msra.mxu0 0
    %675 = vmatprep.subr.bf16.mxu0 0
    %676 = vmatpush1.bf16.msra.mxu0 0
    %677 = vmatprep.mubr.bf16.mxu0 0
    %678 = vmatmul.mubr.bf16.gmra.mrb[0].mxu0 %v643
    %v679 = vpop.f32.mrb[0].mxu0
    %v680 = vadd.f32 %v116, %v679
    %v681 = vpop.f32.mrb[0].mxu0
    %v682 = vpop.f32.mrb[0].mxu0
    %v683 = vpop.f32.mrb[0].mxu0
    %684 = vdwg.mxu0
    %v685 = vxor.u32 %v680, 2147483648
    %v686 = vmul.f32 %v685, 1.442695
    %v687 = vpow.pop %v686
    %v688 = vadd.f32 %v687, 1.0
    %v689 = vrcp.pop %v688
    %v690 = vmul.f32 1.0, %v689
    %v691 = vmul.f32 %v690, 2.0
    %v692 = vsub.f32 %v691, 1.0
    %v693 = vsel %vm129, %v692, %v690
    %v694 = vmul.f32 %v693, %v631
    %696 = vrot.lane.b32.xlu0 %v693, 64
    %v697 = vpop.permute.xlu0 %696
    %v699 = vmul.f32 %v693, %v697
    %701 = vrot.lane.b32.xlu0 %v699, 32
    %v702 = vpop.permute.xlu0 %701
    %v704 = vadd.f32 %v694, %v702
    %v705 = vtanh.pop %v704
    %707 = vrot.lane.b32.xlu0 %v705, 64
    %v708 = vpop.permute.xlu0 %707
    %v710 = vmul.f32 %v693, %v708
    %v711 = vtanh.pop %v710
    %713 = vrot.lane.b32.xlu0 %v710, 32
    %v714 = vpop.permute.xlu0 %713
    %717 = vrot.lane.b32.xlu0 %v711, 96
    %v718 = vpop.permute.xlu0 %717
    %v720 = vsel %vm130, %v714, %v704
    %vm721 = vcmask 523264
    %v722 = vsel %vm721, %v720, %v718
    %vm723 = vcmask 785408
    %v724 = vsel %vm723, %v722, 0.0
    %725 = vst [vmem:[#allocation2] sm:$0xff] %v724
    // Predicated region
    $region18: #{tpu_custom_call.1} parent=1 // pred_check
      _
    $region19: #{tpu_custom_call.1} parent=1 // pred_check_branch
      %727 = sbr.rel (0) target = $region21
    $region20: #{tpu_custom_call.1} parent=1 // pred_region
      %s729 = ssub.s32 128, 128
      %730 = vsyncadd [#allocation3], %s729
      %s732 = sshll.u32 [#allocation2], 4
      %s733 = int_to_ptr.vmem [resolvable:$true] %s732
      %735 = dma.vmem_to_hbm [thread:$0]  %s733, 128, %s4, [#allocation3]
    $region21: #{tpu_custom_call.1} parent=1 // pred_fallthru
      _
    // Predicated region
    $region22: #{tpu_custom_call.1} parent=1 // pred_check
      _
    $region23: #{tpu_custom_call.1} parent=1 // pred_check_branch
      %737 = sbr.rel (0) target = $region25
    $region24: #{tpu_custom_call.1} parent=1 // pred_region
      %738 = dma.done [#allocation3], 128
    $region25: #{tpu_custom_call.1} parent=1 // pred_fallthru
      _
    %739 = vsyncpa [#allocation3], 1

</llo_original>
